<compile_context>
chip_gen: v7x
topology: tpu7x:2x2x1
jax: 0.10.0
libtpu: 0.0.40
codegen_flags: <defaults>
</compile_context>

<pallas_src>
import functools

import jax
import jax.numpy as jnp
from jax.experimental import pallas as pl
from jax.experimental.pallas import tpu as pltpu


def _round_up(x, m):
    return ((x + m - 1) // m) * m


def _ffn_kernel(x_ref, w1_ref, b1_ref, w2_ref, b2_ref, o_ref, acc_ref):
    # grid = (i: token tiles [parallel], k: d_ff slabs [arbitrary reduction])
    # x_ref : (TM, Dm)      token tile (constant index over k -> no re-DMA)
    # w1_ref: (Dm, TF)      W1^T slab (columns k of d_ff)
    # b1_ref: (1, TF)       b1 slab
    # w2_ref: (TF, Dm)      W2^T slab (rows k of d_ff)
    # b2_ref: (1, Dm)       b2 (constant index -> resident)
    # o_ref : (TM, Dm)      output tile, resident across k
    # acc_ref: (TM, Dm) f32 scratch accumulator
    k = pl.program_id(1)

    @pl.when(k == 0)
    def _():
        # Seed the accumulator with the output bias (broadcast over rows) so
        # the epilogue is just a cast + store.
        acc_ref[...] = jnp.broadcast_to(b2_ref[...], acc_ref.shape)

    # First matmul slab on the MXU, f32 accumulate.
    h = jnp.dot(x_ref[...], w1_ref[...], preferred_element_type=jnp.float32)
    # Bias + ReLU in f32 on the VPU.
    h = jnp.maximum(h + b1_ref[...], 0.0)
    # TODO(synk): training-mode dropout omitted (eval-mode identity); would use
    # pltpu.prng_seed + pltpu.stateful_bernoulli.
    # Second matmul slab accumulates into the resident f32 scratch.
    acc_ref[...] += jnp.dot(h.astype(w2_ref.dtype), w2_ref[...],
                            preferred_element_type=jnp.float32)

    @pl.when(k == pl.num_programs(1) - 1)
    def _():
        o_ref[...] = acc_ref[...].astype(o_ref.dtype)


def _pick_tile_ff(requested, d_model_p, d_ff_p, tile_m, compute_itemsize,
                  out_itemsize, budget_bytes):
    """Largest d_ff slab that keeps double-buffered blocks within budget.

    Prefers the full d_ff (reduction axis of 1 -> weight blocks have a
    constant index map and stay resident in VMEM across all token tiles).
    """
    def vmem_bytes(tf):
        x_blk = tile_m * d_model_p * compute_itemsize
        w1_blk = d_model_p * tf * compute_itemsize
        b1_blk = tf * 4
        w2_blk = tf * d_model_p * compute_itemsize
        b2_blk = d_model_p * 4
        o_blk = tile_m * d_model_p * out_itemsize
        acc = tile_m * d_model_p * 4
        # BlockSpec double-buffers each input/output block.
        return 2 * (x_blk + w1_blk + b1_blk + w2_blk + b2_blk + o_blk) + acc

    if vmem_bytes(d_ff_p) <= budget_bytes:
        return d_ff_p
    tf = min(_round_up(requested, 128), d_ff_p)
    while tf > 128 and vmem_bytes(tf) > budget_bytes:
        tf -= 128
    return max(tf, 128)


@functools.partial(jax.jit, static_argnames=("tile_m", "tile_ff", "compute_dtype"))
def positionwise_ffn(x, w1_t, b1, w2_t, b2, *, tile_m=256, tile_ff=None,
                     compute_dtype=jnp.bfloat16):
    """y = relu(x @ w1_t + b1) @ w2_t + b2.

    x: (tokens, d_model); w1_t: (d_model, d_ff); w2_t: (d_ff, d_model).
    Weights/activations are cast once to `compute_dtype` (bf16 by default) for
    the MXU; accumulation and bias/ReLU stay in f32; output is x.dtype.
    """
    tokens, d_model = x.shape
    d_ff = w1_t.shape[1]
    out_dtype = x.dtype

    # Lane-dense padding: last dims to multiples of 128, token dim to tile_m.
    d_model_p = _round_up(d_model, 128)
    d_ff_p = _round_up(d_ff, 128)

    tokens_p = _round_up(tokens, 8)
    tile_m = min(tile_m, tokens_p)
    tokens_p = _round_up(tokens_p, tile_m)

    compute_itemsize = jnp.dtype(compute_dtype).itemsize
    out_itemsize = jnp.dtype(out_dtype).itemsize
    tile_ff = _pick_tile_ff(
        512 if tile_ff is None else tile_ff,
        d_model_p, d_ff_p, tile_m, compute_itemsize, out_itemsize,
        budget_bytes=24 * 1024 * 1024)      # conservative: fits v7x scoped VMEM
    d_ff_p = _round_up(d_ff_p, tile_ff)

    # One-time host-side casts (not per grid step).
    xc = x.astype(compute_dtype)
    w1c = w1_t.astype(compute_dtype)
    w2c = w2_t.astype(compute_dtype)
    b1f = b1.reshape(1, d_ff).astype(jnp.float32)
    b2f = b2.reshape(1, d_model).astype(jnp.float32)

    # Zero padding keeps the math exact (padded rows/cols contribute 0).
    xp = jnp.pad(xc, ((0, tokens_p - tokens), (0, d_model_p - d_model)))
    w1p = jnp.pad(w1c, ((0, d_model_p - d_model), (0, d_ff_p - d_ff)))
    b1p = jnp.pad(b1f, ((0, 0), (0, d_ff_p - d_ff)))
    w2p = jnp.pad(w2c, ((0, d_ff_p - d_ff), (0, d_model_p - d_model)))
    b2p = jnp.pad(b2f, ((0, 0), (0, d_model_p - d_model)))

    grid = (tokens_p // tile_m, d_ff_p // tile_ff)

    flops = 2 * tokens_p * d_model_p * d_ff_p * 2  # two matmuls
    bytes_accessed = (
        xp.size * xp.dtype.itemsize
        + w1p.size * w1p.dtype.itemsize + b1p.size * b1p.dtype.itemsize
        + w2p.size * w2p.dtype.itemsize + b2p.size * b2p.dtype.itemsize
        + tokens_p * d_model_p * out_itemsize
    )

    out = pl.pallas_call(
        _ffn_kernel,
        out_shape=jax.ShapeDtypeStruct((tokens_p, d_model_p), out_dtype),
        grid_spec=pltpu.PrefetchScalarGridSpec(
            num_scalar_prefetch=0,
            grid=grid,
            in_specs=[
                pl.BlockSpec((tile_m, d_model_p), lambda i, k: (i, 0)),   # x tile
                pl.BlockSpec((d_model_p, tile_ff), lambda i, k: (0, k)),  # W1^T slab
                pl.BlockSpec((1, tile_ff), lambda i, k: (0, k)),          # b1 slab
                pl.BlockSpec((tile_ff, d_model_p), lambda i, k: (k, 0)),  # W2^T slab
                pl.BlockSpec((1, d_model_p), lambda i, k: (0, 0)),        # b2
            ],
            out_specs=pl.BlockSpec((tile_m, d_model_p), lambda i, k: (i, 0)),
            scratch_shapes=[pltpu.VMEM((tile_m, d_model_p), jnp.float32)],
        ),
        compiler_params=pltpu.CompilerParams(
            dimension_semantics=("parallel", "arbitrary"),
            vmem_limit_bytes=48 * 1024 * 1024,   # headroom for v7x's 64 MiB VMEM
        ),
        cost_estimate=pl.CostEstimate(
            flops=flops, transcendentals=0, bytes_accessed=bytes_accessed),
    )(xp, w1p, b1p, w2p, b2p)

    return out[:tokens, :d_model]


def transformer_encoder_ffn_stack(src, layer_params, **kw):
    """Mirrors TransformerEncoder.forward: apply each layer's block in sequence.

    TODO(synk): the encoder layer's self-attention / residual / LayerNorm are
    not defined in the provided spec (the layer is passed in externally), so
    only the position-wise FFN sub-block of each layer is lowered to Pallas.
    """
    batch, seq, d_model = src.shape
    x2d = src.reshape(batch * seq, d_model)
    for (w1_t, b1, w2_t, b2) in layer_params:
        x2d = positionwise_ffn(x2d, w1_t, b1, w2_t, b2, **kw)
    return x2d.reshape(batch, seq, d_model)


if __name__ == "__main__":
    # Small shapes consistent with the module: batch=2, seq=8, d_model=32,
    # d_ff=128, num_layers=2.
    batch, seq, d_model, d_ff, num_layers = 2, 8, 32, 128, 2

    key = jax.random.PRNGKey(0)
    key, kx = jax.random.split(key)
    x = jax.random.normal(kx, (batch, seq, d_model), dtype=jnp.float32)

    # Deterministic per-layer "Linear" params (PyTorch weight is (out, in);
    # we store the transpose (in, out) so the kernel does x @ W + b).
    layer_params = []
    for _ in range(num_layers):
        key, kw1, kb1, kw2, kb2 = jax.random.split(key, 5)
        w1_t = jax.random.normal(kw1, (d_model, d_ff), dtype=jnp.float32) * 0.05
        b1 = jax.random.normal(kb1, (1, d_ff), dtype=jnp.float32) * 0.05
        w2_t = jax.random.normal(kw2, (d_ff, d_model), dtype=jnp.float32) * 0.05
        b2 = jax.random.normal(kb2, (1, d_model), dtype=jnp.float32) * 0.05
        layer_params.append((w1_t, b1, w2_t, b2))

    y = transformer_encoder_ffn_stack(
        x, layer_params, tile_m=256, compute_dtype=jnp.bfloat16)
    y = jax.block_until_ready(y)

    # Pure-JAX reference with the same bf16-compute / f32-accumulate math.
    ref2d = x.reshape(batch * seq, d_model)
    for (w1_t, b1, w2_t, b2) in layer_params:
        h = jnp.dot(ref2d.astype(jnp.bfloat16), w1_t.astype(jnp.bfloat16),
                    preferred_element_type=jnp.float32) + b1
        h = jnp.maximum(h, 0.0)
        ref2d = jnp.dot(h.astype(jnp.bfloat16), w2_t.astype(jnp.bfloat16),
                        preferred_element_type=jnp.float32) + b2
    ref = ref2d.reshape(batch, seq, d_model)

    assert jnp.allclose(y, ref, atol=5e-3, rtol=5e-3), "mismatch vs reference"

    print("KERNEL_OK")
</pallas_src>

<mosaic_0001>
module attributes {stable_mosaic.version = 11 : i64} {
  func.func @_ffn_kernel(%arg0: i32, %arg1: i32, %arg2: memref<16x128xbf16, #tpu.memory_space<vmem>>, %arg3: memref<128x128xbf16, #tpu.memory_space<vmem>>, %arg4: memref<1x128xf32, #tpu.memory_space<vmem>>, %arg5: memref<128x128xbf16, #tpu.memory_space<vmem>>, %arg6: memref<1x128xf32, #tpu.memory_space<vmem>>, %arg7: memref<16x128xf32, #tpu.memory_space<vmem>>, %arg8: memref<16x128xf32, #tpu.memory_space<vmem>>) attributes {dimension_semantics = [#tpu.dimension_semantics<parallel>, #tpu.dimension_semantics<arbitrary>], iteration_bounds = array<i64: 1, 1>, scalar_prefetch = 0 : i64, scratch_operands = 1 : i64, tpu.core_type = #tpu.core_type<tc>, window_params = [{transform_indices = @transform_0, window_bounds = array<i64: 16, 128>}, {transform_indices = @transform_1, window_bounds = array<i64: 128, 128>}, {transform_indices = @transform_2, window_bounds = array<i64: 1, 128>}, {transform_indices = @transform_3, window_bounds = array<i64: 128, 128>}, {pipeline_mode = #tpu.pipeline_mode<synchronous>, transform_indices = @transform_4, window_bounds = array<i64: 1, 128>}, {transform_indices = @transform_5, window_bounds = array<i64: 16, 128>}]} {
    %c0_i32 = arith.constant 0 : i32
    %0 = arith.cmpi eq, %arg1, %c0_i32 : i32
    %1 = arith.extui %0 : i1 to i32
    %c0_i32_0 = arith.constant 0 : i32
    %2 = arith.cmpi ne, %1, %c0_i32_0 : i32
    scf.if %2 {
      %c0_16 = arith.constant 0 : index
      %c0_17 = arith.constant 0 : index
      %20 = vector.load %arg6[%c0_16, %c0_17] : memref<1x128xf32, #tpu.memory_space<vmem>>, vector<1x128xf32>
      %21 = vector.shape_cast %20 : vector<1x128xf32> to vector<1x128xf32>
      %22 = vector.broadcast %21 : vector<1x128xf32> to vector<16x128xf32>
      %c0_18 = arith.constant 0 : index
      %c0_19 = arith.constant 0 : index
      %23 = vector.load %arg8[%c0_18, %c0_19] : memref<16x128xf32, #tpu.memory_space<vmem>>, vector<16x128xf32>
      tpu.vector_store %arg8[%c0_18, %c0_19], %22 {strides = array<i32>} : memref<16x128xf32, #tpu.memory_space<vmem>>, vector<16x128xf32>,
    } else {
    }
    %c0 = arith.constant 0 : index
    %c0_1 = arith.constant 0 : index
    %3 = vector.load %arg2[%c0, %c0_1] : memref<16x128xbf16, #tpu.memory_space<vmem>>, vector<16x128xbf16>
    %c0_2 = arith.constant 0 : index
    %c0_3 = arith.constant 0 : index
    %4 = vector.load %arg3[%c0_2, %c0_3] : memref<128x128xbf16, #tpu.memory_space<vmem>>, vector<128x128xbf16>
    %cst = arith.constant dense<0.000000e+00> : vector<16x128xf32>
    %5 = tpu.matmul %3, %4, %cst {dimension_numbers = #tpu.dot_dimension_numbers<[1], [0], [0], [1], [0, 0, 1, 1], [], []>} : vector<16x128xbf16>, vector<128x128xbf16>, vector<16x128xf32> -> vector<16x128xf32>
    %c0_4 = arith.constant 0 : index
    %c0_5 = arith.constant 0 : index
    %6 = vector.load %arg4[%c0_4, %c0_5] : memref<1x128xf32, #tpu.memory_space<vmem>>, vector<1x128xf32>
    %7 = vector.broadcast %6 : vector<1x128xf32> to vector<16x128xf32>
    %8 = arith.addf %5, %7 : vector<16x128xf32>
    %cst_6 = arith.constant 0.000000e+00 : f32
    %9 = vector.broadcast %cst_6 : f32 to vector<16x128xf32>
    %10 = arith.maximumf %8, %9 : vector<16x128xf32>
    %c0_7 = arith.constant 0 : index
    %c0_8 = arith.constant 0 : index
    %11 = vector.load %arg8[%c0_7, %c0_8] : memref<16x128xf32, #tpu.memory_space<vmem>>, vector<16x128xf32>
    %12 = arith.truncf %10 : vector<16x128xf32> to vector<16x128xbf16>
    %c0_9 = arith.constant 0 : index
    %c0_10 = arith.constant 0 : index
    %13 = vector.load %arg5[%c0_9, %c0_10] : memref<128x128xbf16, #tpu.memory_space<vmem>>, vector<128x128xbf16>
    %cst_11 = arith.constant dense<0.000000e+00> : vector<16x128xf32>
    %14 = tpu.matmul %12, %13, %cst_11 {dimension_numbers = #tpu.dot_dimension_numbers<[1], [0], [0], [1], [0, 0, 1, 1], [], []>} : vector<16x128xbf16>, vector<128x128xbf16>, vector<16x128xf32> -> vector<16x128xf32>
    %15 = arith.addf %11, %14 : vector<16x128xf32>
    %c0_12 = arith.constant 0 : index
    %c0_13 = arith.constant 0 : index
    %16 = vector.load %arg8[%c0_12, %c0_13] : memref<16x128xf32, #tpu.memory_space<vmem>>, vector<16x128xf32>
    tpu.vector_store %arg8[%c0_12, %c0_13], %15 {strides = array<i32>} : memref<16x128xf32, #tpu.memory_space<vmem>>, vector<16x128xf32>,
    %c0_i32_14 = arith.constant 0 : i32
    %17 = arith.cmpi eq, %arg1, %c0_i32_14 : i32
    %18 = arith.extui %17 : i1 to i32
    %c0_i32_15 = arith.constant 0 : i32
    %19 = arith.cmpi ne, %18, %c0_i32_15 : i32
    scf.if %19 {
      %c0_16 = arith.constant 0 : index
      %c0_17 = arith.constant 0 : index
      %20 = vector.load %arg8[%c0_16, %c0_17] : memref<16x128xf32, #tpu.memory_space<vmem>>, vector<16x128xf32>
      %c0_18 = arith.constant 0 : index
      %c0_19 = arith.constant 0 : index
      %21 = vector.load %arg7[%c0_18, %c0_19] : memref<16x128xf32, #tpu.memory_space<vmem>>, vector<16x128xf32>
      tpu.vector_store %arg7[%c0_18, %c0_19], %20 {strides = array<i32>} : memref<16x128xf32, #tpu.memory_space<vmem>>, vector<16x128xf32>,
    } else {
    }
    return
  }
  func.func @transform_0(%arg0: i32, %arg1: i32) -> (i32, i32) {
    %c0_i32 = arith.constant 0 : i32
    %c0_i32_0 = arith.constant 0 : i32
    return %arg0, %c0_i32 : i32, i32
  }
  func.func @transform_1(%arg0: i32, %arg1: i32) -> (i32, i32) {
    %c0_i32 = arith.constant 0 : i32
    %c0_i32_0 = arith.constant 0 : i32
    return %c0_i32, %arg1 : i32, i32
  }
  func.func @transform_2(%arg0: i32, %arg1: i32) -> (i32, i32) {
    %c0_i32 = arith.constant 0 : i32
    %c0_i32_0 = arith.constant 0 : i32
    return %c0_i32, %arg1 : i32, i32
  }
  func.func @transform_3(%arg0: i32, %arg1: i32) -> (i32, i32) {
    %c0_i32 = arith.constant 0 : i32
    %c0_i32_0 = arith.constant 0 : i32
    return %arg1, %c0_i32 : i32, i32
  }
  func.func @transform_4(%arg0: i32, %arg1: i32) -> (i32, i32) {
    %c0_i32 = arith.constant 0 : i32
    %c0_i32_0 = arith.constant 0 : i32
    %c0_i32_1 = arith.constant 0 : i32
    return %c0_i32, %c0_i32_0 : i32, i32
  }
  func.func @transform_5(%arg0: i32, %arg1: i32) -> (i32, i32) {
    %c0_i32 = arith.constant 0 : i32
    %c0_i32_0 = arith.constant 0 : i32
    return %arg0, %c0_i32 : i32, i32
  }
}

</mosaic_0001>

<llo_original>
// kernel: positionwise_ffn.1
$region0: #{positionwise_ffn.1}
  #allocation0 [shape = 'u32[]', space=smem, size = 0x4, offset = 0x4, fixed_abs, tag = 'smem constant byte address 0x4 - core index']
  #allocation1 [shape = 'u32[144,128]{1,0:T(1,128)}', space=vmem, size = 0x12000, scoped, tag = 'internal scratch']
  #allocation2 [shape = 'f32[16,128]{1,0:T(8,128)}', space=vmem, size = 0x2000, scoped, tag = 'scratch operand']
  %s0 = inlined_call_operand.vmem [shape: bf16[16,128], index: 0, kind: input, shape index: {}]
  %s1 = inlined_call_operand.vmem [shape: bf16[128,128], index: 1, kind: input, shape index: {}]
  %s2 = inlined_call_operand.vmem [shape: f32[1,128], index: 2, kind: input, shape index: {}]
  %s3 = inlined_call_operand.vmem [shape: bf16[128,128], index: 3, kind: input, shape index: {}]
  %s4 = inlined_call_operand.vmem [shape: f32[1,128], index: 4, kind: input, shape index: {}]
  %s5 = inlined_call_operand.hbm [shape: f32[16,128], index: 5, kind: output, shape index: {}]
  %s6 = sld [smem:[#allocation0]]
  $region38: #{positionwise_ffn.1} parent=0
    _
  %s8 = ssub.s32 1, %s6
  %s9 = scalar_select 0, %s8, %s6
  $region1: #{positionwise_ffn.1} parent=0
    #allocation3 [shape = 'u8[8192]{0}', space=vmem, size = 0x2000, scoped, tag = 'output window, operand 0, single buffered']
    #allocation4 [shape = 's32[1]{0}', space=sflag, size = 0x4, scoped, tag = 'scoped memory for positionwise_ffn.1']
    %10 = vsyncpa [#allocation4], 0
    // Predicated region
    $region2: #{positionwise_ffn.1} parent=1 // pred_check
      _
    $region3: #{positionwise_ffn.1} parent=1 // pred_check_branch
      %12 = sbr.rel (0) target = $region5
    $region4: #{positionwise_ffn.1} parent=1 // pred_region
      _
    $region5: #{positionwise_ffn.1} parent=1 // pred_fallthru
      _
    // Predicated region
    $region6: #{positionwise_ffn.1} parent=1 // pred_check
      _
    $region7: #{positionwise_ffn.1} parent=1 // pred_check_branch
      %14 = sbr.rel (0) target = $region9
    $region8: #{positionwise_ffn.1} parent=1 // pred_region
      _
    $region9: #{positionwise_ffn.1} parent=1 // pred_fallthru
      _
    // Predicated region
    $region10: #{positionwise_ffn.1} parent=1 // pred_check
      _
    $region11: #{positionwise_ffn.1} parent=1 // pred_check_branch
      %16 = sbr.rel (0) target = $region13
    $region12: #{positionwise_ffn.1} parent=1 // pred_region
      _
    $region13: #{positionwise_ffn.1} parent=1 // pred_fallthru
      _
    // Predicated region
    $region14: #{positionwise_ffn.1} parent=1 // pred_check
      _
    $region15: #{positionwise_ffn.1} parent=1 // pred_check_branch
      %18 = sbr.rel (0) target = $region17
    $region16: #{positionwise_ffn.1} parent=1 // pred_region
      _
    $region17: #{positionwise_ffn.1} parent=1 // pred_fallthru
      _
    // Predicated region
    $region18: #{positionwise_ffn.1} parent=1 // pred_check
      _
    $region19: #{positionwise_ffn.1} parent=1 // pred_check_branch
      %20 = sbr.rel (0) target = $region21
    $region20: #{positionwise_ffn.1} parent=1 // pred_region
      _
    $region21: #{positionwise_ffn.1} parent=1 // pred_fallthru
      _
    %p22 = scmp.eq.s32.totalorder 0, 0
    // Predicated region
    $region22: #{positionwise_ffn.1} parent=1 // pred_check
      %p23 = pneg %p22
    $region23: #{positionwise_ffn.1} parent=1 // pred_check_branch
      %25 = sbr.rel (%p23) target = $region25
    $region24: #{positionwise_ffn.1} parent=1 // pred_region
      %v26 = vld [vmem:[%s4] sm:$0x1]
      %v28 = vlaneseq
      %v29 = vshrl.u32 %v28, 7
      %v30 = vsub.s32 0, %v29
      %v31 = vrot.slane %v26, %v30
      %33 = vst [vmem:[#allocation2] sm:$0xff] %v31
      %34 = vst [vmem:[#allocation2 + $0x8] sm:$0xff] %v31
    $region25: #{positionwise_ffn.1} parent=1 // pred_fallthru
      _
    %v35 = vld [vmem:[%s0] sm:$0xf]
    %v36 = vld [vmem:[%s0 + $0x4] sm:$0xf]
    %v37 = vld [vmem:[%s1] sm:$0xf]
    %v38 = vld [vmem:[%s1 + $0x4] sm:$0xf]
    %v39 = vld [vmem:[%s1 + $0x8] sm:$0xf]
    %v40 = vld [vmem:[%s1 + $0xc] sm:$0xf]
    %v41 = vld [vmem:[%s1 + $0x10] sm:$0xf]
    %v42 = vld [vmem:[%s1 + $0x14] sm:$0xf]
    %v43 = vld [vmem:[%s1 + $0x18] sm:$0xf]
    %v44 = vld [vmem:[%s1 + $0x1c] sm:$0xf]
    %v45 = vld [vmem:[%s1 + $0x20] sm:$0xf]
    %v46 = vld [vmem:[%s1 + $0x24] sm:$0xf]
    %v47 = vld [vmem:[%s1 + $0x28] sm:$0xf]
    %v48 = vld [vmem:[%s1 + $0x2c] sm:$0xf]
    %v49 = vld [vmem:[%s1 + $0x30] sm:$0xf]
    %v50 = vld [vmem:[%s1 + $0x34] sm:$0xf]
    %v51 = vld [vmem:[%s1 + $0x38] sm:$0xf]
    %v52 = vld [vmem:[%s1 + $0x3c] sm:$0xf]
    %v53 = vld [vmem:[%s2] sm:$0x1]
    %v55 = vlaneseq
    %v56 = vshrl.u32 %v55, 7
    %v57 = vsub.s32 0, %v56
    %v58 = vrot.slane %v53, %v57
    %v62 = vunpack.c.l.b16 %v35
    %v63 = vunpack.c.l.b16 %v36
    %v64 = vpack.c.b16 %v63, %v62
    %v82 = vunpack.c.l.b16 %v37
    %v83 = vunpack.c.l.b16 %v38
    %v84 = vunpack.c.l.b16 %v39
    %v85 = vunpack.c.l.b16 %v40
    %v86 = vunpack.c.l.b16 %v41
    %v87 = vunpack.c.l.b16 %v42
    %v88 = vunpack.c.l.b16 %v43
    %v89 = vunpack.c.l.b16 %v44
    %v90 = vunpack.c.l.b16 %v45
    %v91 = vunpack.c.l.b16 %v46
    %v92 = vunpack.c.l.b16 %v47
    %v93 = vunpack.c.l.b16 %v48
    %v94 = vunpack.c.l.b16 %v49
    %v95 = vunpack.c.l.b16 %v50
    %v96 = vunpack.c.l.b16 %v51
    %v97 = vunpack.c.l.b16 %v52
    %v98 = vpack.c.b16 %v83, %v82
    %v99 = vpack.c.b16 %v85, %v84
    %v100 = vpack.c.b16 %v87, %v86
    %v101 = vpack.c.b16 %v89, %v88
    %v102 = vpack.c.b16 %v91, %v90
    %v103 = vpack.c.b16 %v93, %v92
    %v104 = vpack.c.b16 %v95, %v94
    %v105 = vpack.c.b16 %v97, %v96
    %114 = vmatprep.subr.bf16.mxu0 0
    %115 = vmatpush1.bf16.msra.mxu0 %v98
    %116 = vmatprep.subr.bf16.mxu0 0
    %117 = vmatpush1.bf16.msra.mxu0 %v99
    %118 = vmatprep.subr.bf16.mxu0 0
    %119 = vmatpush1.bf16.msra.mxu0 %v100
    %120 = vmatprep.subr.bf16.mxu0 0
    %121 = vmatpush1.bf16.msra.mxu0 %v101
    %122 = vmatprep.subr.bf16.mxu0 0
    %123 = vmatpush1.bf16.msra.mxu0 %v102
    %124 = vmatprep.subr.bf16.mxu0 0
    %125 = vmatpush1.bf16.msra.mxu0 %v103
    %126 = vmatprep.subr.bf16.mxu0 0
    %127 = vmatpush1.bf16.msra.mxu0 %v104
    %128 = vmatprep.subr.bf16.mxu0 0
    %129 = vmatpush1.bf16.msra.mxu0 %v105
    %130 = vmatprep.subr.bf16.mxu0 0
    %131 = vmatpush1.bf16.msra.mxu0 0
    %132 = vmatprep.subr.bf16.mxu0 0
    %133 = vmatpush1.bf16.msra.mxu0 0
    %134 = vmatprep.subr.bf16.mxu0 0
    %135 = vmatpush1.bf16.msra.mxu0 0
    %136 = vmatprep.subr.bf16.mxu0 0
    %137 = vmatpush1.bf16.msra.mxu0 0
    %138 = vmatprep.subr.bf16.mxu0 0
    %139 = vmatpush1.bf16.msra.mxu0 0
    %140 = vmatprep.subr.bf16.mxu0 0
    %141 = vmatpush1.bf16.msra.mxu0 0
    %142 = vmatprep.subr.bf16.mxu0 0
    %143 = vmatpush1.bf16.msra.mxu0 0
    %144 = vmatprep.subr.bf16.mxu0 0
    %145 = vmatpush1.bf16.msra.mxu0 0
    %146 = vmatprep.mubr.bf16.mxu0 0
    %147 = vmatmul.mubr.bf16.gmra.mrb[0].mxu0 %v64
    %v148 = vpop.f32.mrb[0].mxu0
    %v149 = vadd.f32 %v58, %v148
    %v150 = vpop.f32.mrb[0].mxu0
    %v151 = vpop.f32.mrb[0].mxu0
    %v152 = vadd.f32 %v58, %v151
    %v153 = vpop.f32.mrb[0].mxu0
    %154 = vdwg.mxu0
    %v155 = vmax.f32 %v149, 0.0
    %v156 = vmax.f32 %v152, 0.0
    %v157 = vld [vmem:[#allocation2] sm:$0xff]
    %v158 = vld [vmem:[#allocation2 + $0x8] sm:$0xff]
    %v159 = vpack.c.bf16 %v156, %v155
    %v160 = vld [vmem:[%s3] sm:$0xf]
    %v161 = vld [vmem:[%s3 + $0x4] sm:$0xf]
    %v162 = vld [vmem:[%s3 + $0x8] sm:$0xf]
    %v163 = vld [vmem:[%s3 + $0xc] sm:$0xf]
    %v164 = vld [vmem:[%s3 + $0x10] sm:$0xf]
    %v165 = vld [vmem:[%s3 + $0x14] sm:$0xf]
    %v166 = vld [vmem:[%s3 + $0x18] sm:$0xf]
    %v167 = vld [vmem:[%s3 + $0x1c] sm:$0xf]
    %v168 = vld [vmem:[%s3 + $0x20] sm:$0xf]
    %v169 = vld [vmem:[%s3 + $0x24] sm:$0xf]
    %v170 = vld [vmem:[%s3 + $0x28] sm:$0xf]
    %v171 = vld [vmem:[%s3 + $0x2c] sm:$0xf]
    %v172 = vld [vmem:[%s3 + $0x30] sm:$0xf]
    %v173 = vld [vmem:[%s3 + $0x34] sm:$0xf]
    %v174 = vld [vmem:[%s3 + $0x38] sm:$0xf]
    %v175 = vld [vmem:[%s3 + $0x3c] sm:$0xf]
    %v192 = vunpack.c.l.b16 %v160
    %v193 = vunpack.c.l.b16 %v161
    %v194 = vunpack.c.l.b16 %v162
    %v195 = vunpack.c.l.b16 %v163
    %v196 = vunpack.c.l.b16 %v164
    %v197 = vunpack.c.l.b16 %v165
    %v198 = vunpack.c.l.b16 %v166
    %v199 = vunpack.c.l.b16 %v167
    %v200 = vunpack.c.l.b16 %v168
    %v201 = vunpack.c.l.b16 %v169
    %v202 = vunpack.c.l.b16 %v170
    %v203 = vunpack.c.l.b16 %v171
    %v204 = vunpack.c.l.b16 %v172
    %v205 = vunpack.c.l.b16 %v173
    %v206 = vunpack.c.l.b16 %v174
    %v207 = vunpack.c.l.b16 %v175
    %v208 = vpack.c.b16 %v193, %v192
    %v209 = vpack.c.b16 %v195, %v194
    %v210 = vpack.c.b16 %v197, %v196
    %v211 = vpack.c.b16 %v199, %v198
    %v212 = vpack.c.b16 %v201, %v200
    %v213 = vpack.c.b16 %v203, %v202
    %v214 = vpack.c.b16 %v205, %v204
    %v215 = vpack.c.b16 %v207, %v206
    %224 = vmatprep.subr.bf16.mxu0 0
    %225 = vmatpush1.bf16.msra.mxu0 %v208
    %226 = vmatprep.subr.bf16.mxu0 0
    %227 = vmatpush1.bf16.msra.mxu0 %v209
    %228 = vmatprep.subr.bf16.mxu0 0
    %229 = vmatpush1.bf16.msra.mxu0 %v210
    %230 = vmatprep.subr.bf16.mxu0 0
    %231 = vmatpush1.bf16.msra.mxu0 %v211
    %232 = vmatprep.subr.bf16.mxu0 0
    %233 = vmatpush1.bf16.msra.mxu0 %v212
    %234 = vmatprep.subr.bf16.mxu0 0
    %235 = vmatpush1.bf16.msra.mxu0 %v213
    %236 = vmatprep.subr.bf16.mxu0 0
    %237 = vmatpush1.bf16.msra.mxu0 %v214
    %238 = vmatprep.subr.bf16.mxu0 0
    %239 = vmatpush1.bf16.msra.mxu0 %v215
    %240 = vmatprep.subr.bf16.mxu0 0
    %241 = vmatpush1.bf16.msra.mxu0 0
    %242 = vmatprep.subr.bf16.mxu0 0
    %243 = vmatpush1.bf16.msra.mxu0 0
    %244 = vmatprep.subr.bf16.mxu0 0
    %245 = vmatpush1.bf16.msra.mxu0 0
    %246 = vmatprep.subr.bf16.mxu0 0
    %247 = vmatpush1.bf16.msra.mxu0 0
    %248 = vmatprep.subr.bf16.mxu0 0
    %249 = vmatpush1.bf16.msra.mxu0 0
    %250 = vmatprep.subr.bf16.mxu0 0
    %251 = vmatpush1.bf16.msra.mxu0 0
    %252 = vmatprep.subr.bf16.mxu0 0
    %253 = vmatpush1.bf16.msra.mxu0 0
    %254 = vmatprep.subr.bf16.mxu0 0
    %255 = vmatpush1.bf16.msra.mxu0 0
    %256 = vmatprep.mubr.bf16.mxu0 0
    %257 = vmatmul.mubr.bf16.gmra.mrb[0].mxu0 %v159
    %v258 = vpop.f32.mrb[0].mxu0
    %v259 = vadd.f32 0.0, %v258
    %v260 = vpop.f32.mrb[0].mxu0
    %v261 = vpop.f32.mrb[0].mxu0
    %v262 = vadd.f32 0.0, %v261
    %v263 = vpop.f32.mrb[0].mxu0
    %264 = vdwg.mxu0
    %v265 = vadd.f32 %v157, %v259
    %v266 = vadd.f32 %v158, %v262
    %267 = vst [vmem:[#allocation2] sm:$0xff] %v265
    %268 = vst [vmem:[#allocation2 + $0x8] sm:$0xff] %v266
    // Predicated region
    $region26: #{positionwise_ffn.1} parent=1 // pred_check
      %p269 = pneg %p22
    $region27: #{positionwise_ffn.1} parent=1 // pred_check_branch
      %271 = sbr.rel (%p269) target = $region29
    $region28: #{positionwise_ffn.1} parent=1 // pred_region
      %v272 = vld [vmem:[#allocation2] sm:$0xff]
      %v273 = vld [vmem:[#allocation2 + $0x8] sm:$0xff]
      %274 = vst [vmem:[#allocation3] sm:$0xff] %v272
      %275 = vst [vmem:[#allocation3 + $0x8] sm:$0xff] %v273
    $region29: #{positionwise_ffn.1} parent=1 // pred_fallthru
      _
    // Predicated region
    $region30: #{positionwise_ffn.1} parent=1 // pred_check
      _
    $region31: #{positionwise_ffn.1} parent=1 // pred_check_branch
      %277 = sbr.rel (0) target = $region33
    $region32: #{positionwise_ffn.1} parent=1 // pred_region
      %s279 = ssub.s32 256, 256
      %280 = vsyncadd [#allocation4], %s279
      %s281 = sshll.u32 [#allocation3], 4
      %s282 = int_to_ptr.vmem [resolvable:$true] %s281
      %287 = dma.vmem_to_hbm [thread:$0]  %s282, 256, %s5, [#allocation4], 128, 128, 8
    $region33: #{positionwise_ffn.1} parent=1 // pred_fallthru
      _
    // Predicated region
    $region34: #{positionwise_ffn.1} parent=1 // pred_check
      _
    $region35: #{positionwise_ffn.1} parent=1 // pred_check_branch
      %289 = sbr.rel (0) target = $region37
    $region36: #{positionwise_ffn.1} parent=1 // pred_region
      %290 = dma.done [#allocation4], 256
    $region37: #{positionwise_ffn.1} parent=1 // pred_fallthru
      _
    %291 = vsyncpa [#allocation4], 1

</llo_original>
